<compile_context>
chip_gen: v5e
topology: v5e:2x2
jax: 0.10.0
libtpu: 0.0.40
codegen_flags: <defaults>
</compile_context>

<pallas_src>
import functools

import jax
import jax.numpy as jnp
from jax.experimental import pallas as pl
from jax.experimental.pallas import tpu as pltpu

_LANE = 128
_SUBLANE = 8
_VMEM_TILE_BUDGET = 12 * 1024 * 1024   # per-step working-set target (all generations)
_VMEM_LIMIT = 32 * 1024 * 1024         # explicit scoped-VMEM limit (safe on v5e..v7x)


def _round_up(x, m):
    return ((x + m - 1) // m) * m


def _padded_vmem_bytes(shape, dtype):
    """Approximate VMEM bytes of an array incl. (sublane, lane) tile padding."""
    shape = tuple(shape)
    if len(shape) < 2:
        shape = (1,) * (2 - len(shape)) + shape
    itemsize = jnp.dtype(dtype).itemsize
    sub_tile = _SUBLANE * max(1, 4 // itemsize)     # packed sublanes for <32-bit dtypes
    lead = 1
    for d in shape[:-2]:
        lead *= d
    return lead * _round_up(shape[-2], sub_tile) * _round_up(shape[-1], _LANE) * itemsize


# --------------------------------------------------------------------------
# Kernels
# --------------------------------------------------------------------------
def _fused_kernel(x_ref, w_ref, b_ref, o_ref, *, bg, C, P, nH, nW):
    """Fused patchify + projection.

    x_ref: (bg, C, H, W) input dtype        w_ref: (K, E_pad) compute dtype
    b_ref: (1, E_pad) f32                   o_ref: (bg*nH*nW, E_pad) out dtype
    """
    cp = C * P
    W = nW * P
    strips = []
    for b in range(bg):                       # static unroll (bg * nH is small)
        for i in range(nH):
            s = x_ref[b, :, i * P:(i + 1) * P, :]   # (C, P, W) one patch-row strip
            s = s.reshape(cp, W).T                  # (W, C*P): rows=(j,q), lanes=(c,p)
            # Row-major re-read as (nW, K): patch row j, K order (q, c, p).
            strips.append(s.reshape(nW, P * cp))
    patches = jnp.concatenate(strips, axis=0) if len(strips) > 1 else strips[0]
    patches = patches.astype(w_ref.dtype)           # bf16 operands, f32 accumulate
    acc = jnp.dot(patches, w_ref[...], preferred_element_type=jnp.float32)
    o_ref[...] = (acc + b_ref[...]).astype(o_ref.dtype)


def _matmul_kernel(p_ref, w_ref, b_ref, o_ref):
    """Fallback: plain (tm, K) @ (K, E_pad) + bias on pre-extracted patches."""
    acc = jnp.dot(p_ref[...], w_ref[...], preferred_element_type=jnp.float32)
    o_ref[...] = (acc + b_ref[...]).astype(o_ref.dtype)


# --------------------------------------------------------------------------
# Host-side helpers
# --------------------------------------------------------------------------
def _prep_weights(weight, bias, E_pad, compute_dtype):
    """Conv weight (E, C, P, P) -> (K, E_pad) in K order (q, c, p); f32 bias."""
    E, C, P, _ = weight.shape
    K = C * P * P
    w_mat = weight.transpose(3, 1, 2, 0).reshape(K, E).astype(compute_dtype)
    b_vec = bias.astype(jnp.float32)
    if E_pad != E:
        w_mat = jnp.pad(w_mat, ((0, 0), (0, E_pad - E)))
        b_vec = jnp.pad(b_vec, (0, E_pad - E))
    return w_mat, b_vec.reshape(1, E_pad)


def _fused_per_image_bytes(C, H, W, N, K, E_pad, x_dtype, compute_dtype, out_dtype):
    return (2 * _padded_vmem_bytes((C, H, W), x_dtype)       # double-buffered input block
            + _padded_vmem_bytes((N, K), x_dtype)            # repacked patches (input dtype)
            + _padded_vmem_bytes((N, K), compute_dtype)      # bf16 cast copy
            + _padded_vmem_bytes((N, E_pad), jnp.float32)    # f32 accumulator
            + 2 * _padded_vmem_bytes((N, E_pad), out_dtype)) # double-buffered output block


def _choose_bg(B, N, per_image_bytes, fixed_bytes):
    """Images per grid step: smallest bg with bg*N >= 256 rows (keeps the grid
    long for pipelining / v7x's two cores) that fits the VMEM budget and keeps
    the output block sublane-aligned (or full-extent)."""
    feasible = []
    for bg in range(1, B + 1):
        if B % bg:
            continue
        if (bg * N) % _SUBLANE != 0 and bg != B:
            continue
        if fixed_bytes + bg * per_image_bytes > _VMEM_TILE_BUDGET and bg != 1:
            continue
        feasible.append(bg)
    if not feasible:
        return B
    for bg in feasible:
        if bg * N >= 256:
            return bg
    return feasible[-1]


def _choose_tm(M, K, E_pad, compute_dtype, out_dtype):
    """Fallback-path M tile: VMEM-budgeted, capped for pipelining, divisor-snapped."""
    if M <= 256:
        return M                                            # single full-extent block
    fixed = _padded_vmem_bytes((K, E_pad), compute_dtype)    # grid-invariant weight (x1)
    per_row = 2 * (K * jnp.dtype(compute_dtype).itemsize
                   + E_pad * jnp.dtype(out_dtype).itemsize)  # double-buffered in/out rows
    tm = (_VMEM_TILE_BUDGET - fixed) // max(per_row, 1)
    tm = max(256, min(1024, (tm // 256) * 256))
    # keep >= ~4 grid steps so v7x's two TensorCores both get work
    tm = min(tm, max(256, _round_up(pl.cdiv(M, 4), 256)))
    # snap to a divisor of M (no ragged final block) if one is reasonably close
    for d in range(tm, max(tm // 2, _SUBLANE) - 1, -_SUBLANE):
        if M % d == 0:
            return d
    return min(tm, M)


# --------------------------------------------------------------------------
# pallas_call wrappers
# --------------------------------------------------------------------------
def _patch_embed_fused(x, w_mat, b_mat, P, out_dtype, compute_dtype):
    B, C, H, W = x.shape
    nH, nW = H // P, W // P
    N, K = nH * nW, C * P * P
    E_pad = w_mat.shape[1]
    M = B * N

    per_img = _fused_per_image_bytes(C, H, W, N, K, E_pad, x.dtype, compute_dtype, out_dtype)
    fixed = (_padded_vmem_bytes((K, E_pad), compute_dtype)
             + _padded_vmem_bytes((1, E_pad), jnp.float32))
    bg = _choose_bg(B, N, per_img, fixed)
    if fixed + bg * per_img > _VMEM_LIMIT:
        raise ValueError("fused patch-embed tile does not fit VMEM; use tiled fallback")

    kernel = functools.partial(_fused_kernel, bg=bg, C=C, P=P, nH=nH, nW=nW)
    cost = pl.CostEstimate(
        flops=2 * M * K * E_pad,
        transcendentals=0,
        bytes_accessed=(x.size * x.dtype.itemsize
                        + K * E_pad * jnp.dtype(compute_dtype).itemsize
                        + E_pad * 4
                        + M * E_pad * jnp.dtype(out_dtype).itemsize),
    )
    return pl.pallas_call(
        kernel,
        out_shape=jax.ShapeDtypeStruct((M, E_pad), out_dtype),
        grid_spec=pltpu.PrefetchScalarGridSpec(
            num_scalar_prefetch=0,
            grid=(B // bg,),
            in_specs=[
                pl.BlockSpec((bg, C, H, W), lambda s: (s, 0, 0, 0)),   # raw NCHW images
                pl.BlockSpec((K, E_pad), lambda s: (0, 0)),            # grid-invariant
                pl.BlockSpec((1, E_pad), lambda s: (0, 0)),            # grid-invariant
            ],
            out_specs=pl.BlockSpec((bg * N, E_pad), lambda s: (s, 0)),
        ),
        compiler_params=pltpu.CompilerParams(
            dimension_semantics=("parallel",),
            vmem_limit_bytes=_VMEM_LIMIT,
        ),
        cost_estimate=cost,
    )(x, w_mat, b_mat)


def _patch_embed_unfused(x, w_mat, b_mat, P, out_dtype, compute_dtype):
    B, C, H, W = x.shape
    nH, nW = H // P, W // P
    N, K = nH * nW, C * P * P
    E_pad = w_mat.shape[1]
    M = B * N

    # Materialize the patch matrix in compute_dtype (bf16) so the extra HBM
    # pass is half-width.  Same K order (q, c, p) as the fused path / w_mat.
    patches = x.astype(compute_dtype)
    patches = patches.reshape(B, C, nH, P, nW, P).transpose(0, 2, 4, 5, 1, 3)
    patches = patches.reshape(M, K)

    tm = _choose_tm(M, K, E_pad, compute_dtype, out_dtype)
    cost = pl.CostEstimate(
        flops=2 * M * K * E_pad,
        transcendentals=0,
        bytes_accessed=(M * K * jnp.dtype(compute_dtype).itemsize
                        + K * E_pad * jnp.dtype(compute_dtype).itemsize
                        + E_pad * 4
                        + M * E_pad * jnp.dtype(out_dtype).itemsize),
    )
    return pl.pallas_call(
        _matmul_kernel,
        out_shape=jax.ShapeDtypeStruct((M, E_pad), out_dtype),
        grid_spec=pltpu.PrefetchScalarGridSpec(
            num_scalar_prefetch=0,
            grid=(pl.cdiv(M, tm),),
            in_specs=[
                pl.BlockSpec((tm, K), lambda i: (i, 0)),
                pl.BlockSpec((K, E_pad), lambda i: (0, 0)),   # grid-invariant
                pl.BlockSpec((1, E_pad), lambda i: (0, 0)),   # grid-invariant
            ],
            out_specs=pl.BlockSpec((tm, E_pad), lambda i: (i, 0)),
        ),
        compiler_params=pltpu.CompilerParams(
            dimension_semantics=("parallel",),
            vmem_limit_bytes=_VMEM_LIMIT,
        ),
        cost_estimate=cost,
    )(patches, w_mat, b_mat)


def patch_embedding(x, weight, bias, patch_size, *, out_dtype=None,
                    compute_dtype=jnp.bfloat16):
    """Conv2d(C->E, kernel=stride=P) + flatten to (B, N, E), as in the module.

    out_dtype=None keeps x.dtype (matches the PyTorch module); pass
    jnp.bfloat16 to halve the output HBM stream if downstream tolerates it.
    compute_dtype is the MXU operand dtype (accumulation is always f32).
    """
    B, C, H, W = x.shape
    E = weight.shape[0]
    P = patch_size
    if H % P or W % P:
        raise ValueError(f"spatial dims {(H, W)} must be divisible by patch_size={P}")
    nH, nW = H // P, W // P
    N = nH * nW
    out_dtype = jnp.dtype(x.dtype if out_dtype is None else out_dtype)
    E_pad = _round_up(E, _LANE)                       # lane-dense output stores
    w_mat, b_mat = _prep_weights(weight, bias, E_pad, compute_dtype)

    out = None
    try:
        # Primary: fused patchify (no materialized patch matrix in HBM).
        out = _patch_embed_fused(x, w_mat, b_mat, P, out_dtype, compute_dtype)
    except Exception:
        # The in-VMEM lane-merge reshape / strip concat are the only ops whose
        # Mosaic lowering support varies by jax release or exotic shapes; fall
        # back to the known-good tiled-matmul path (same numerics).
        out = None
    if out is None:
        out = _patch_embed_unfused(x, w_mat, b_mat, P, out_dtype, compute_dtype)

    out = out.reshape(B, N, E_pad)
    if E_pad != E:
        out = out[:, :, :E]
    return out


if __name__ == "__main__":
    # Small shapes consistent with the module: in_channels=4, patch_size=8,
    # emb_size=32, image 16x16 -> 4 patches per image.
    B, C, H, W = 2, 4, 16, 16
    P = 8
    E = 32

    key = jax.random.PRNGKey(0)
    kx, kw, kb = jax.random.split(key, 3)
    x = jax.random.normal(kx, (B, C, H, W), dtype=jnp.float32)
    # Synthetic conv params (shapes match nn.Conv2d(C, E, P, P)).
    weight = jax.random.normal(kw, (E, C, P, P), dtype=jnp.float32) * 0.02
    bias = jax.random.normal(kb, (E,), dtype=jnp.float32) * 0.02

    out = patch_embedding(x, weight, bias, P)
    out = jax.block_until_ready(out)

    # Reference: lax conv (== PyTorch Conv2d NCHW) + permute/reshape.
    # Tolerance relaxed because the kernel uses bf16 operands (f32 accumulate).
    ref = jax.lax.conv_general_dilated(
        x, weight, window_strides=(P, P), padding="VALID",
        dimension_numbers=("NCHW", "OIHW", "NCHW"),
    ) + bias.reshape(1, E, 1, 1)
    ref = ref.transpose(0, 2, 3, 1).reshape(B, (H // P) * (W // P), E)
    assert out.shape == (B, (H // P) * (W // P), E)
    assert jnp.allclose(out, ref, atol=5e-2, rtol=5e-2)

    print("KERNEL_OK")
</pallas_src>

<mosaic_0001>
module attributes {stable_mosaic.version = 11 : i64} {
  func.func @_fused_kernel(%arg0: i32, %arg1: memref<2x4x16x16xf32, #tpu.memory_space<vmem>>, %arg2: memref<256x128xbf16, #tpu.memory_space<vmem>>, %arg3: memref<1x128xf32, #tpu.memory_space<vmem>>, %arg4: memref<8x128xf32, #tpu.memory_space<vmem>>) attributes {dimension_semantics = [#tpu.dimension_semantics<parallel>], iteration_bounds = array<i64: 1>, scalar_prefetch = 0 : i64, scratch_operands = 0 : i64, tpu.core_type = #tpu.core_type<tc>, window_params = [{transform_indices = @transform_0, window_bounds = array<i64: 2, 4, 16, 16>}, {pipeline_mode = #tpu.pipeline_mode<synchronous>, transform_indices = @transform_1, window_bounds = array<i64: 256, 128>}, {pipeline_mode = #tpu.pipeline_mode<synchronous>, transform_indices = @transform_2, window_bounds = array<i64: 1, 128>}, {transform_indices = @transform_3, window_bounds = array<i64: 8, 128>}]} {
    %c0 = arith.constant 0 : index
    %c0_0 = arith.constant 0 : index
    %c0_1 = arith.constant 0 : index
    %c0_2 = arith.constant 0 : index
    %0 = vector.load %arg1[%c0, %c0_0, %c0_1, %c0_2] : memref<2x4x16x16xf32, #tpu.memory_space<vmem>>, vector<1x4x8x16xf32>
    %1 = vector.shape_cast %0 : vector<1x4x8x16xf32> to vector<4x8x16xf32>
    %2 = vector.shape_cast %1 : vector<4x8x16xf32> to vector<32x16xf32>
    %3 = tpu.transpose %2, [1, 0] : vector<32x16xf32> -> vector<16x32xf32>
    %4 = vector.shape_cast %3 : vector<16x32xf32> to vector<2x256xf32>
    %c0_3 = arith.constant 0 : index
    %c0_4 = arith.constant 0 : index
    %c8 = arith.constant 8 : index
    %c0_5 = arith.constant 0 : index
    %5 = vector.load %arg1[%c0_3, %c0_4, %c8, %c0_5] : memref<2x4x16x16xf32, #tpu.memory_space<vmem>>, vector<1x4x8x16xf32>
    %6 = vector.shape_cast %5 : vector<1x4x8x16xf32> to vector<4x8x16xf32>
    %7 = vector.shape_cast %6 : vector<4x8x16xf32> to vector<32x16xf32>
    %8 = tpu.transpose %7, [1, 0] : vector<32x16xf32> -> vector<16x32xf32>
    %9 = vector.shape_cast %8 : vector<16x32xf32> to vector<2x256xf32>
    %c1 = arith.constant 1 : index
    %c0_6 = arith.constant 0 : index
    %c0_7 = arith.constant 0 : index
    %c0_8 = arith.constant 0 : index
    %10 = vector.load %arg1[%c1, %c0_6, %c0_7, %c0_8] : memref<2x4x16x16xf32, #tpu.memory_space<vmem>>, vector<1x4x8x16xf32>
    %11 = vector.shape_cast %10 : vector<1x4x8x16xf32> to vector<4x8x16xf32>
    %12 = vector.shape_cast %11 : vector<4x8x16xf32> to vector<32x16xf32>
    %13 = tpu.transpose %12, [1, 0] : vector<32x16xf32> -> vector<16x32xf32>
    %14 = vector.shape_cast %13 : vector<16x32xf32> to vector<2x256xf32>
    %c1_9 = arith.constant 1 : index
    %c0_10 = arith.constant 0 : index
    %c8_11 = arith.constant 8 : index
    %c0_12 = arith.constant 0 : index
    %15 = vector.load %arg1[%c1_9, %c0_10, %c8_11, %c0_12] : memref<2x4x16x16xf32, #tpu.memory_space<vmem>>, vector<1x4x8x16xf32>
    %16 = vector.shape_cast %15 : vector<1x4x8x16xf32> to vector<4x8x16xf32>
    %17 = vector.shape_cast %16 : vector<4x8x16xf32> to vector<32x16xf32>
    %18 = tpu.transpose %17, [1, 0] : vector<32x16xf32> -> vector<16x32xf32>
    %19 = vector.shape_cast %18 : vector<16x32xf32> to vector<2x256xf32>
    %20 = tpu.concatenate %4, %9, %14, %19 in 0 : vector<2x256xf32>, vector<2x256xf32>, vector<2x256xf32>, vector<2x256xf32> -> vector<8x256xf32>
    %21 = arith.truncf %20 : vector<8x256xf32> to vector<8x256xbf16>
    %c0_13 = arith.constant 0 : index
    %c0_14 = arith.constant 0 : index
    %22 = vector.load %arg2[%c0_13, %c0_14] : memref<256x128xbf16, #tpu.memory_space<vmem>>, vector<256x128xbf16>
    %cst = arith.constant dense<0.000000e+00> : vector<8x128xf32>
    %23 = tpu.matmul %21, %22, %cst {dimension_numbers = #tpu.dot_dimension_numbers<[1], [0], [0], [1], [0, 0, 1, 1], [], []>} : vector<8x256xbf16>, vector<256x128xbf16>, vector<8x128xf32> -> vector<8x128xf32>
    %c0_15 = arith.constant 0 : index
    %c0_16 = arith.constant 0 : index
    %24 = vector.load %arg3[%c0_15, %c0_16] : memref<1x128xf32, #tpu.memory_space<vmem>>, vector<1x128xf32>
    %25 = vector.broadcast %24 : vector<1x128xf32> to vector<8x128xf32>
    %26 = arith.addf %23, %25 : vector<8x128xf32>
    %c0_17 = arith.constant 0 : index
    %c0_18 = arith.constant 0 : index
    %27 = vector.load %arg4[%c0_17, %c0_18] : memref<8x128xf32, #tpu.memory_space<vmem>>, vector<8x128xf32>
    tpu.vector_store %arg4[%c0_17, %c0_18], %26 {strides = array<i32>} : memref<8x128xf32, #tpu.memory_space<vmem>>, vector<8x128xf32>,
    return
  }
  func.func @transform_0(%arg0: i32) -> (i32, i32, i32, i32) {
    %c0_i32 = arith.constant 0 : i32
    %c0_i32_0 = arith.constant 0 : i32
    %c0_i32_1 = arith.constant 0 : i32
    %c0_i32_2 = arith.constant 0 : i32
    return %arg0, %c0_i32, %c0_i32_0, %c0_i32_1 : i32, i32, i32, i32
  }
  func.func @transform_1(%arg0: i32) -> (i32, i32) {
    %c0_i32 = arith.constant 0 : i32
    %c0_i32_0 = arith.constant 0 : i32
    %c0_i32_1 = arith.constant 0 : i32
    return %c0_i32, %c0_i32_0 : i32, i32
  }
  func.func @transform_2(%arg0: i32) -> (i32, i32) {
    %c0_i32 = arith.constant 0 : i32
    %c0_i32_0 = arith.constant 0 : i32
    %c0_i32_1 = arith.constant 0 : i32
    return %c0_i32, %c0_i32_0 : i32, i32
  }
  func.func @transform_3(%arg0: i32) -> (i32, i32) {
    %c0_i32 = arith.constant 0 : i32
    %c0_i32_0 = arith.constant 0 : i32
    return %arg0, %c0_i32 : i32, i32
  }
}

module attributes {stable_mosaic.version = 11 : i64} {
  func.func @_matmul_kernel(%arg0: i32, %arg1: memref<8x256xbf16, #tpu.memory_space<vmem>>, %arg2: memref<256x128xbf16, #tpu.memory_space<vmem>>, %arg3: memref<1x128xf32, #tpu.memory_space<vmem>>, %arg4: memref<8x128xf32, #tpu.memory_space<vmem>>) attributes {dimension_semantics = [#tpu.dimension_semantics<parallel>], iteration_bounds = array<i64: 1>, scalar_prefetch = 0 : i64, scratch_operands = 0 : i64, tpu.core_type = #tpu.core_type<tc>, window_params = [{transform_indices = @transform_0, window_bounds = array<i64: 8, 256>}, {pipeline_mode = #tpu.pipeline_mode<synchronous>, transform_indices = @transform_1, window_bounds = array<i64: 256, 128>}, {pipeline_mode = #tpu.pipeline_mode<synchronous>, transform_indices = @transform_2, window_bounds = array<i64: 1, 128>}, {transform_indices = @transform_3, window_bounds = array<i64: 8, 128>}]} {
    %c0 = arith.constant 0 : index
    %c0_0 = arith.constant 0 : index
    %0 = vector.load %arg1[%c0, %c0_0] : memref<8x256xbf16, #tpu.memory_space<vmem>>, vector<8x256xbf16>
    %c0_1 = arith.constant 0 : index
    %c0_2 = arith.constant 0 : index
    %1 = vector.load %arg2[%c0_1, %c0_2] : memref<256x128xbf16, #tpu.memory_space<vmem>>, vector<256x128xbf16>
    %cst = arith.constant dense<0.000000e+00> : vector<8x128xf32>
    %2 = tpu.matmul %0, %1, %cst {dimension_numbers = #tpu.dot_dimension_numbers<[1], [0], [0], [1], [0, 0, 1, 1], [], []>} : vector<8x256xbf16>, vector<256x128xbf16>, vector<8x128xf32> -> vector<8x128xf32>
    %c0_3 = arith.constant 0 : index
    %c0_4 = arith.constant 0 : index
    %3 = vector.load %arg3[%c0_3, %c0_4] : memref<1x128xf32, #tpu.memory_space<vmem>>, vector<1x128xf32>
    %4 = vector.broadcast %3 : vector<1x128xf32> to vector<8x128xf32>
    %5 = arith.addf %2, %4 : vector<8x128xf32>
    %c0_5 = arith.constant 0 : index
    %c0_6 = arith.constant 0 : index
    %6 = vector.load %arg4[%c0_5, %c0_6] : memref<8x128xf32, #tpu.memory_space<vmem>>, vector<8x128xf32>
    tpu.vector_store %arg4[%c0_5, %c0_6], %5 {strides = array<i32>} : memref<8x128xf32, #tpu.memory_space<vmem>>, vector<8x128xf32>,
    return
  }
  func.func @transform_0(%arg0: i32) -> (i32, i32) {
    %c0_i32 = arith.constant 0 : i32
    %c0_i32_0 = arith.constant 0 : i32
    return %arg0, %c0_i32 : i32, i32
  }
  func.func @transform_1(%arg0: i32) -> (i32, i32) {
    %c0_i32 = arith.constant 0 : i32
    %c0_i32_0 = arith.constant 0 : i32
    %c0_i32_1 = arith.constant 0 : i32
    return %c0_i32, %c0_i32_0 : i32, i32
  }
  func.func @transform_2(%arg0: i32) -> (i32, i32) {
    %c0_i32 = arith.constant 0 : i32
    %c0_i32_0 = arith.constant 0 : i32
    %c0_i32_1 = arith.constant 0 : i32
    return %c0_i32, %c0_i32_0 : i32, i32
  }
  func.func @transform_3(%arg0: i32) -> (i32, i32) {
    %c0_i32 = arith.constant 0 : i32
    %c0_i32_0 = arith.constant 0 : i32
    return %arg0, %c0_i32 : i32, i32
  }
}

</mosaic_0001>

<llo_original>
// kernel: tpu_custom_call.1
$region0: #{tpu_custom_call.1}
  #allocation0 [shape = 'u32[]', space=smem, size = 0x4, offset = 0x4, fixed_abs, tag = 'smem constant byte address 0x4 - core index']
  #allocation1 [shape = 'u32[72,128]{1,0:T(1,128)}', space=vmem, size = 0x9000, scoped, tag = 'internal scratch']
  %s0 = inlined_call_operand.hbm [shape: bf16[8,256], index: 0, kind: input, shape index: {}]
  %s1 = inlined_call_operand.hbm [shape: bf16[256,128], index: 1, kind: input, shape index: {}]
  %s2 = inlined_call_operand.vmem [shape: f32[1,128], index: 2, kind: input, shape index: {}]
  %s3 = inlined_call_operand.hbm [shape: f32[8,128], index: 3, kind: output, shape index: {}]
  %s4 = sld [smem:[#allocation0]]
  $region30: #{tpu_custom_call.1} parent=0
    _
  %s6 = ssub.s32 1, %s4
  %s7 = scalar_select 0, %s6, %s4
  $region1: #{tpu_custom_call.1} parent=0
    #allocation2 [shape = 'u8[4096]{0}', space=vmem, size = 0x1000, scoped, tag = 'input window, operand 0, single buffered']
    #allocation3 [shape = 's32[1]{0}', space=sflag, size = 0x4, scoped, tag = 'scoped memory for tpu_custom_call.1']
    #allocation4 [shape = 's32[1]{0}', space=sflag, size = 0x4, scoped, tag = 'scoped memory for tpu_custom_call.1']
    #allocation5 [shape = 'u8[65536]{0}', space=vmem, size = 0x10000, scoped, tag = 'input window, operand 1, single buffered']
    #allocation6 [shape = 's32[1]{0}', space=sflag, size = 0x4, scoped, tag = 'scoped memory for tpu_custom_call.1']
    #allocation7 [shape = 'u8[4096]{0}', space=vmem, size = 0x1000, scoped, tag = 'output window, operand 0, single buffered']
    %8 = vsyncpa [#allocation3], 0
    %9 = vsyncpa [#allocation6], 0
    %10 = vsyncpa [#allocation4], 0
    // Predicated region
    $region2: #{tpu_custom_call.1} parent=1 // pred_check
      _
    $region3: #{tpu_custom_call.1} parent=1 // pred_check_branch
      %12 = sbr.rel (0) target = $region5
    $region4: #{tpu_custom_call.1} parent=1 // pred_region
      %14 = vsyncadd [#allocation3], 0
      %s16 = sshll.u32 %s0, 4
      %s17 = int_to_ptr.hbm [resolvable:$true] %s16
      %s18 = sshll.u32 [#allocation2], 4
      %s19 = int_to_ptr.vmem [resolvable:$true] %s18
      %21 = dma.hbm_to_vmem [thread:$0]  %s17, 128, %s19, [#allocation3]
    $region5: #{tpu_custom_call.1} parent=1 // pred_fallthru
      _
    // Predicated region
    $region6: #{tpu_custom_call.1} parent=1 // pred_check
      _
    $region7: #{tpu_custom_call.1} parent=1 // pred_check_branch
      %23 = sbr.rel (0) target = $region9
    $region8: #{tpu_custom_call.1} parent=1 // pred_region
      %25 = vsyncadd [#allocation6], 0
      %s26 = sshll.u32 %s1, 4
      %s27 = int_to_ptr.hbm [resolvable:$true] %s26
      %s28 = sshll.u32 [#allocation5], 4
      %s29 = int_to_ptr.vmem [resolvable:$true] %s28
      %34 = dma.hbm_to_vmem [thread:$0]  %s27, 2048, %s29, [#allocation6], 64, 64, 4
    $region9: #{tpu_custom_call.1} parent=1 // pred_fallthru
      _
    // Predicated region
    $region10: #{tpu_custom_call.1} parent=1 // pred_check
      _
    $region11: #{tpu_custom_call.1} parent=1 // pred_check_branch
      %36 = sbr.rel (0) target = $region13
    $region12: #{tpu_custom_call.1} parent=1 // pred_region
      _
    $region13: #{tpu_custom_call.1} parent=1 // pred_fallthru
      _
    // Predicated region
    $region14: #{tpu_custom_call.1} parent=1 // pred_check
      _
    $region15: #{tpu_custom_call.1} parent=1 // pred_check_branch
      %38 = sbr.rel (0) target = $region17
    $region16: #{tpu_custom_call.1} parent=1 // pred_region
      %40 = dma.done [#allocation3], 128
    $region17: #{tpu_custom_call.1} parent=1 // pred_fallthru
      _
    // Predicated region
    $region18: #{tpu_custom_call.1} parent=1 // pred_check
      _
    $region19: #{tpu_custom_call.1} parent=1 // pred_check_branch
      %42 = sbr.rel (0) target = $region21
    $region20: #{tpu_custom_call.1} parent=1 // pred_region
      %44 = dma.done [#allocation6], 2048
    $region21: #{tpu_custom_call.1} parent=1 // pred_fallthru
      _
    %v45 = vld [vmem:[#allocation2] sm:$0xff]
    %v46 = vld [vmem:[#allocation5] sm:$0xf]
    %v47 = vld [vmem:[#allocation5 + $0x4] sm:$0xf]
    %v48 = vld [vmem:[#allocation5 + $0x8] sm:$0xf]
    %v49 = vld [vmem:[#allocation5 + $0xc] sm:$0xf]
    %v50 = vld [vmem:[#allocation5 + $0x10] sm:$0xf]
    %v51 = vld [vmem:[#allocation5 + $0x14] sm:$0xf]
    %v52 = vld [vmem:[#allocation5 + $0x18] sm:$0xf]
    %v53 = vld [vmem:[#allocation5 + $0x1c] sm:$0xf]
    %v54 = vld [vmem:[#allocation5 + $0x20] sm:$0xf]
    %v55 = vld [vmem:[#allocation5 + $0x24] sm:$0xf]
    %v56 = vld [vmem:[#allocation5 + $0x28] sm:$0xf]
    %v57 = vld [vmem:[#allocation5 + $0x2c] sm:$0xf]
    %v58 = vld [vmem:[#allocation5 + $0x30] sm:$0xf]
    %v59 = vld [vmem:[#allocation5 + $0x34] sm:$0xf]
    %v60 = vld [vmem:[#allocation5 + $0x38] sm:$0xf]
    %v61 = vld [vmem:[#allocation5 + $0x3c] sm:$0xf]
    %v62 = vld [vmem:[#allocation5 + $0x40] sm:$0xf]
    %v63 = vld [vmem:[#allocation5 + $0x44] sm:$0xf]
    %v64 = vld [vmem:[#allocation5 + $0x48] sm:$0xf]
    %v65 = vld [vmem:[#allocation5 + $0x4c] sm:$0xf]
    %v66 = vld [vmem:[#allocation5 + $0x50] sm:$0xf]
    %v67 = vld [vmem:[#allocation5 + $0x54] sm:$0xf]
    %v68 = vld [vmem:[#allocation5 + $0x58] sm:$0xf]
    %v69 = vld [vmem:[#allocation5 + $0x5c] sm:$0xf]
    %v70 = vld [vmem:[#allocation5 + $0x60] sm:$0xf]
    %v71 = vld [vmem:[#allocation5 + $0x64] sm:$0xf]
    %v72 = vld [vmem:[#allocation5 + $0x68] sm:$0xf]
    %v73 = vld [vmem:[#allocation5 + $0x6c] sm:$0xf]
    %v74 = vld [vmem:[#allocation5 + $0x70] sm:$0xf]
    %v75 = vld [vmem:[#allocation5 + $0x74] sm:$0xf]
    %v76 = vld [vmem:[#allocation5 + $0x78] sm:$0xf]
    %v77 = vld [vmem:[#allocation5 + $0x7c] sm:$0xf]
    %v78 = vld [vmem:[%s2] sm:$0x1]
    %v80 = vperm.slane %v78, 0
    %v83 = vunpack.c.l.b16 %v45
    %v84 = vunpack.c.h.b16 %v45
    %v85 = vpack.c.b16 %v83, %v83
    %v86 = vpack.c.b16 %v84, %v84
    %v121 = vunpack.c.l.b16 %v46
    %v122 = vunpack.c.l.b16 %v47
    %v123 = vunpack.c.l.b16 %v48
    %v124 = vunpack.c.l.b16 %v49
    %v125 = vunpack.c.l.b16 %v50
    %v126 = vunpack.c.l.b16 %v51
    %v127 = vunpack.c.l.b16 %v52
    %v128 = vunpack.c.l.b16 %v53
    %v129 = vunpack.c.l.b16 %v54
    %v130 = vunpack.c.l.b16 %v55
    %v131 = vunpack.c.l.b16 %v56
    %v132 = vunpack.c.l.b16 %v57
    %v133 = vunpack.c.l.b16 %v58
    %v134 = vunpack.c.l.b16 %v59
    %v135 = vunpack.c.l.b16 %v60
    %v136 = vunpack.c.l.b16 %v61
    %v137 = vunpack.c.l.b16 %v62
    %v138 = vunpack.c.l.b16 %v63
    %v139 = vunpack.c.l.b16 %v64
    %v140 = vunpack.c.l.b16 %v65
    %v141 = vunpack.c.l.b16 %v66
    %v142 = vunpack.c.l.b16 %v67
    %v143 = vunpack.c.l.b16 %v68
    %v144 = vunpack.c.l.b16 %v69
    %v145 = vunpack.c.l.b16 %v70
    %v146 = vunpack.c.l.b16 %v71
    %v147 = vunpack.c.l.b16 %v72
    %v148 = vunpack.c.l.b16 %v73
    %v149 = vunpack.c.l.b16 %v74
    %v150 = vunpack.c.l.b16 %v75
    %v151 = vunpack.c.l.b16 %v76
    %v152 = vunpack.c.l.b16 %v77
    %v153 = vpack.c.b16 %v122, %v121
    %v154 = vpack.c.b16 %v124, %v123
    %v155 = vpack.c.b16 %v126, %v125
    %v156 = vpack.c.b16 %v128, %v127
    %v157 = vpack.c.b16 %v130, %v129
    %v158 = vpack.c.b16 %v132, %v131
    %v159 = vpack.c.b16 %v134, %v133
    %v160 = vpack.c.b16 %v136, %v135
    %v161 = vpack.c.b16 %v138, %v137
    %v162 = vpack.c.b16 %v140, %v139
    %v163 = vpack.c.b16 %v142, %v141
    %v164 = vpack.c.b16 %v144, %v143
    %v165 = vpack.c.b16 %v146, %v145
    %v166 = vpack.c.b16 %v148, %v147
    %v167 = vpack.c.b16 %v150, %v149
    %v168 = vpack.c.b16 %v152, %v151
    %185 = vmatpush.bf16.msra.mxu0 %v160
    %186 = vmatpush.bf16.msra.mxu0 %v159
    %187 = vmatpush.bf16.msra.mxu0 %v158
    %188 = vmatpush.bf16.msra.mxu0 %v157
    %189 = vmatpush.bf16.msra.mxu0 %v156
    %190 = vmatpush.bf16.msra.mxu0 %v155
    %191 = vmatpush.bf16.msra.mxu0 %v154
    %192 = vmatpush.bf16.msra.mxu0 %v153
    %193 = vmatmul.bf16.gmra.mxu0 %v85
    %v194 = vpop.f32.mrf.mxu0
    %v195 = vadd.f32 %v80, %v194
    %v196 = vpop.f32.mrf.mxu0
    %197 = vdwg.mxu0
    %198 = vmatpush.bf16.msra.mxu0 %v168
    %199 = vmatpush.bf16.msra.mxu0 %v167
    %200 = vmatpush.bf16.msra.mxu0 %v166
    %201 = vmatpush.bf16.msra.mxu0 %v165
    %202 = vmatpush.bf16.msra.mxu0 %v164
    %203 = vmatpush.bf16.msra.mxu0 %v163
    %204 = vmatpush.bf16.msra.mxu0 %v162
    %205 = vmatpush.bf16.msra.mxu0 %v161
    %206 = vmatmul.bf16.gmra.mxu0 %v86
    %v207 = vpop.f32.mrf.mxu0
    %v208 = vadd.f32 %v195, %v207
    %v209 = vpop.f32.mrf.mxu0
    %210 = vdwg.mxu0
    %211 = vst [vmem:[#allocation7] sm:$0xff] %v208
    // Predicated region
    $region22: #{tpu_custom_call.1} parent=1 // pred_check
      _
    $region23: #{tpu_custom_call.1} parent=1 // pred_check_branch
      %213 = sbr.rel (0) target = $region25
    $region24: #{tpu_custom_call.1} parent=1 // pred_region
      %215 = vsyncadd [#allocation4], 0
      %s217 = sshll.u32 [#allocation7], 4
      %s218 = int_to_ptr.vmem [resolvable:$true] %s217
      %s219 = sshll.u32 %s3, 4
      %s220 = int_to_ptr.hbm [resolvable:$true] %s219
      %222 = dma.vmem_to_hbm [thread:$0]  %s218, 128, %s220, [#allocation4]
    $region25: #{tpu_custom_call.1} parent=1 // pred_fallthru
      _
    // Predicated region
    $region26: #{tpu_custom_call.1} parent=1 // pred_check
      _
    $region27: #{tpu_custom_call.1} parent=1 // pred_check_branch
      %224 = sbr.rel (0) target = $region29
    $region28: #{tpu_custom_call.1} parent=1 // pred_region
      %226 = dma.done [#allocation4], 128
    $region29: #{tpu_custom_call.1} parent=1 // pred_fallthru
      _
    %227 = vsyncpa [#allocation3], 1
    %228 = vsyncpa [#allocation6], 1
    %229 = vsyncpa [#allocation4], 1

</llo_original>
